<compile_context>
chip_gen: v5e
topology: v5e:2x2
jax: 0.10.0
libtpu: 0.0.40
codegen_flags: <defaults>
</compile_context>

<pallas_src>
import math
import functools

import jax
import jax.numpy as jnp
from jax.experimental import pallas as pl
from jax.experimental.pallas import tpu as pltpu


_VMEM_CAP = 48 << 20      # v7x-safe ceiling (64 MiB physical per TensorCore)
_TILE_BUDGET = 40 << 20   # target tile footprint used for tile selection


def _round_up(x, m):
    return ((x + m - 1) // m) * m


def _pick_tile(n, candidates):
    for c in candidates:
        if c <= n and n % c == 0:
            return c
    return n


# --------------------- kernel 1: support = X @ W ---------------------------
def _support_kernel(x_ref, w_ref, o_ref, acc_ref):
    k = pl.program_id(2)

    @pl.when(k == 0)
    def _():
        acc_ref[...] = jnp.zeros_like(acc_ref)

    acc_ref[...] += jnp.dot(
        x_ref[...].astype(jnp.bfloat16),
        w_ref[...].astype(jnp.bfloat16),
        preferred_element_type=jnp.float32,
    )

    @pl.when(k == pl.num_programs(2) - 1)
    def _():
        o_ref[...] = acc_ref[...].astype(o_ref.dtype)


# ------------- kernel 2: out = adj @ support + bias, K-tiled ----------------
def _aggregate_kernel(adj_ref, s_ref, b_ref, o_ref, *, tk, resident):
    k = pl.program_id(1)

    # Fold the bias into the accumulator init (output block is VMEM-resident
    # across the reduction axis; bias-less path passes a zero vector).
    @pl.when(k == 0)
    def _():
        o_ref[...] = jnp.broadcast_to(b_ref[...], o_ref.shape).astype(o_ref.dtype)

    if resident:
        # support lives fully in VMEM; slice the current K chunk out of it.
        start = pl.multiple_of(k * tk, 128)
        sup = s_ref[pl.ds(start, tk), :]
    else:
        sup = s_ref[...]

    o_ref[...] += jnp.dot(
        adj_ref[...].astype(jnp.bfloat16),
        sup.astype(jnp.bfloat16),
        preferred_element_type=jnp.float32,
    ).astype(o_ref.dtype)


def graph_convolution(x, adj, weight, bias=None):
    """Pallas forward pass of GraphConvolution.

    x      : (N, in_features)  float32
    adj    : (N, N)            float32
    weight : (in_features, out_features) float32
    bias   : (out_features,)   float32 or None
    """
    n, in_f = x.shape
    assert adj.shape == (n, n)
    assert weight.shape[0] == in_f
    out_f = weight.shape[1]
    out_dtype = jnp.float32

    # Pad rows to a multiple of 128 only when N is ragged (zero rows/cols are
    # mathematically inert).  Feature dims are never padded.
    n_pad = n if n % 128 == 0 else _round_up(n, 128)
    x_p = x if n_pad == n else jnp.pad(x, ((0, n_pad - n), (0, 0)))
    adj_p = adj if n_pad == n else jnp.pad(adj, ((0, n_pad - n), (0, n_pad - n)))

    # ------------------ 1) support = X @ W (bf16 MXU, f32 accum) ------------
    tk_in = _pick_tile(in_f, (512, 256, 128))      # K tile over in_features
    tn_s = _pick_tile(out_f, (512, 256, 128))      # N tile over out_features
    tm_s = 128
    for c in (512, 256, 128):
        if c <= n_pad and n_pad % c == 0:
            f = (2 * c * tk_in * 4 + 2 * tk_in * tn_s * 4
                 + 2 * c * tn_s * 2 + c * tn_s * 4)
            if f <= _TILE_BUDGET:
                tm_s = c
                break
    vmem1 = (2 * tm_s * tk_in * 4 + 2 * tk_in * tn_s * 4
             + 2 * tm_s * tn_s * 2 + tm_s * tn_s * 4)

    support = pl.pallas_call(
        _support_kernel,
        out_shape=jax.ShapeDtypeStruct((n_pad, out_f), jnp.bfloat16),
        grid_spec=pltpu.PrefetchScalarGridSpec(
            num_scalar_prefetch=0,
            grid=(n_pad // tm_s, out_f // tn_s, in_f // tk_in),
            in_specs=[
                pl.BlockSpec((tm_s, tk_in), lambda i, j, k: (i, k)),   # X
                pl.BlockSpec((tk_in, tn_s), lambda i, j, k: (k, j)),   # W
            ],
            out_specs=pl.BlockSpec((tm_s, tn_s), lambda i, j, k: (i, j)),
            scratch_shapes=[pltpu.VMEM((tm_s, tn_s), jnp.float32)],
        ),
        compiler_params=pltpu.CompilerParams(
            dimension_semantics=("parallel", "parallel", "arbitrary"),
            vmem_limit_bytes=min(max(2 * vmem1, 16 << 20), _VMEM_CAP),
        ),
        cost_estimate=pl.CostEstimate(
            flops=2 * n_pad * in_f * out_f,
            transcendentals=0,
            bytes_accessed=4 * (n_pad * in_f + in_f * out_f) + 2 * n_pad * out_f,
        ),
    )(x_p, weight)

    # -------- 2) out = adj @ support + bias, K-tiled accumulation -----------
    tm = _pick_tile(n_pad, (256, 128))             # output rows per step
    sup_bytes = 2 * n_pad * out_f                  # bf16 support
    resident = sup_bytes <= (12 << 20)             # keep whole support in VMEM?

    fixed = ((2 * sup_bytes if resident else 0)    # support buffer(s)
             + 2 * tm * out_f * 4                  # output block (f32)
             + 2 * out_f * 4)                      # bias
    tk = 128
    for c in (2048, 1024, 512, 256, 128):
        if c <= n_pad and n_pad % c == 0:
            stream = 0 if resident else 2 * c * out_f * 2
            if fixed + stream + 2 * tm * c * 4 <= _TILE_BUDGET:
                tk = c
                break
    vmem2 = fixed + (0 if resident else 2 * tk * out_f * 2) + 2 * tm * tk * 4

    bias_arr = bias if bias is not None else jnp.zeros((out_f,), out_dtype)
    b_p = bias_arr.reshape(1, out_f).astype(out_dtype)

    if resident:
        sup_spec = pl.BlockSpec((n_pad, out_f), lambda i, k: (0, 0))
    else:
        sup_spec = pl.BlockSpec((tk, out_f), lambda i, k: (k, 0))

    out_p = pl.pallas_call(
        functools.partial(_aggregate_kernel, tk=tk, resident=resident),
        out_shape=jax.ShapeDtypeStruct((n_pad, out_f), out_dtype),
        grid_spec=pltpu.PrefetchScalarGridSpec(
            num_scalar_prefetch=0,
            grid=(n_pad // tm, n_pad // tk),
            in_specs=[
                pl.BlockSpec((tm, tk), lambda i, k: (i, k)),          # adj
                sup_spec,                                             # support
                pl.BlockSpec((1, out_f), lambda i, k: (0, 0)),        # bias
            ],
            out_specs=pl.BlockSpec((tm, out_f), lambda i, k: (i, 0)),
        ),
        compiler_params=pltpu.CompilerParams(
            dimension_semantics=("parallel", "arbitrary"),
            vmem_limit_bytes=min(max(2 * vmem2, 16 << 20), _VMEM_CAP),
        ),
        cost_estimate=pl.CostEstimate(
            flops=2 * n_pad * n_pad * out_f,
            transcendentals=0,
            bytes_accessed=(4 * n_pad * n_pad
                            + 2 * n_pad * out_f * (1 if resident else n_pad // tm)
                            + 4 * n_pad * out_f + 4 * out_f),
        ),
    )(adj_p, support, b_p)

    return out_p if n_pad == n else out_p[:n]


if __name__ == "__main__":
    # Small, deterministic problem: N nodes, in_features -> out_features.
    N, IN_F, OUT_F = 128, 64, 32
    key = jax.random.PRNGKey(0)
    k_x, k_adj, k_w, k_b = jax.random.split(key, 4)

    x = jax.random.normal(k_x, (N, IN_F), dtype=jnp.float32)
    # Symmetric-ish normalized adjacency stand-in.
    adj = jax.random.uniform(k_adj, (N, N), dtype=jnp.float32) / N

    # Parameter init mirroring reset_parameters(): U(-stdv, stdv),
    # stdv = 1/sqrt(out_features).
    stdv = 1.0 / math.sqrt(OUT_F)
    weight = jax.random.uniform(k_w, (IN_F, OUT_F), dtype=jnp.float32,
                                minval=-stdv, maxval=stdv)
    bias = jax.random.uniform(k_b, (OUT_F,), dtype=jnp.float32,
                              minval=-stdv, maxval=stdv)

    out = graph_convolution(x, adj, weight, bias)
    out = jax.block_until_ready(out)

    # Correctness check against pure-JAX f32 reference (bf16 MXU path =>
    # looser tolerance than pure-f32).
    ref = adj @ (x @ weight) + bias
    assert out.shape == (N, OUT_F)
    assert jnp.allclose(out, ref, atol=2e-2, rtol=2e-2), "mismatch vs reference"

    # Also exercise the bias-less path.
    out_nb = jax.block_until_ready(graph_convolution(x, adj, weight, None))
    ref_nb = adj @ (x @ weight)
    assert jnp.allclose(out_nb, ref_nb, atol=2e-2, rtol=2e-2), "mismatch (no bias)"

    print("KERNEL_OK")
</pallas_src>

<mosaic_0001>
module attributes {stable_mosaic.version = 11 : i64} {
  func.func @_support_kernel(%arg0: i32, %arg1: i32, %arg2: i32, %arg3: memref<128x64xf32, #tpu.memory_space<vmem>>, %arg4: memref<64x32xf32, #tpu.memory_space<vmem>>, %arg5: memref<128x32xbf16, #tpu.memory_space<vmem>>, %arg6: memref<128x32xf32, #tpu.memory_space<vmem>>) attributes {dimension_semantics = [#tpu.dimension_semantics<parallel>, #tpu.dimension_semantics<parallel>, #tpu.dimension_semantics<arbitrary>], iteration_bounds = array<i64: 1, 1, 1>, scalar_prefetch = 0 : i64, scratch_operands = 1 : i64, tpu.core_type = #tpu.core_type<tc>, window_params = [{transform_indices = @transform_0, window_bounds = array<i64: 128, 64>}, {transform_indices = @transform_1, window_bounds = array<i64: 64, 32>}, {transform_indices = @transform_2, window_bounds = array<i64: 128, 32>}]} {
    %c0_i32 = arith.constant 0 : i32
    %0 = arith.cmpi eq, %arg2, %c0_i32 : i32
    %1 = arith.extui %0 : i1 to i32
    %c0_i32_0 = arith.constant 0 : i32
    %2 = arith.cmpi ne, %1, %c0_i32_0 : i32
    scf.if %2 {
      %cst_10 = arith.constant 0.000000e+00 : f32
      %14 = vector.broadcast %cst_10 : f32 to vector<128x32xf32>
      %c0_11 = arith.constant 0 : index
      %c0_12 = arith.constant 0 : index
      %15 = vector.load %arg6[%c0_11, %c0_12] : memref<128x32xf32, #tpu.memory_space<vmem>>, vector<128x32xf32>
      tpu.vector_store %arg6[%c0_11, %c0_12], %14 {strides = array<i32>} : memref<128x32xf32, #tpu.memory_space<vmem>>, vector<128x32xf32>,
    } else {
    }
    %c0 = arith.constant 0 : index
    %c0_1 = arith.constant 0 : index
    %3 = vector.load %arg6[%c0, %c0_1] : memref<128x32xf32, #tpu.memory_space<vmem>>, vector<128x32xf32>
    %c0_2 = arith.constant 0 : index
    %c0_3 = arith.constant 0 : index
    %4 = vector.load %arg3[%c0_2, %c0_3] : memref<128x64xf32, #tpu.memory_space<vmem>>, vector<128x64xf32>
    %5 = arith.truncf %4 : vector<128x64xf32> to vector<128x64xbf16>
    %c0_4 = arith.constant 0 : index
    %c0_5 = arith.constant 0 : index
    %6 = vector.load %arg4[%c0_4, %c0_5] : memref<64x32xf32, #tpu.memory_space<vmem>>, vector<64x32xf32>
    %7 = arith.truncf %6 : vector<64x32xf32> to vector<64x32xbf16>
    %cst = arith.constant dense<0.000000e+00> : vector<128x32xf32>
    %8 = tpu.matmul %5, %7, %cst {dimension_numbers = #tpu.dot_dimension_numbers<[1], [0], [0], [1], [0, 0, 1, 1], [], []>} : vector<128x64xbf16>, vector<64x32xbf16>, vector<128x32xf32> -> vector<128x32xf32>
    %9 = arith.addf %3, %8 : vector<128x32xf32>
    %c0_6 = arith.constant 0 : index
    %c0_7 = arith.constant 0 : index
    %10 = vector.load %arg6[%c0_6, %c0_7] : memref<128x32xf32, #tpu.memory_space<vmem>>, vector<128x32xf32>
    tpu.vector_store %arg6[%c0_6, %c0_7], %9 {strides = array<i32>} : memref<128x32xf32, #tpu.memory_space<vmem>>, vector<128x32xf32>,
    %c0_i32_8 = arith.constant 0 : i32
    %11 = arith.cmpi eq, %arg2, %c0_i32_8 : i32
    %12 = arith.extui %11 : i1 to i32
    %c0_i32_9 = arith.constant 0 : i32
    %13 = arith.cmpi ne, %12, %c0_i32_9 : i32
    scf.if %13 {
      %c0_10 = arith.constant 0 : index
      %c0_11 = arith.constant 0 : index
      %14 = vector.load %arg6[%c0_10, %c0_11] : memref<128x32xf32, #tpu.memory_space<vmem>>, vector<128x32xf32>
      %15 = arith.truncf %14 : vector<128x32xf32> to vector<128x32xbf16>
      %c0_12 = arith.constant 0 : index
      %c0_13 = arith.constant 0 : index
      %16 = vector.load %arg5[%c0_12, %c0_13] : memref<128x32xbf16, #tpu.memory_space<vmem>>, vector<128x32xbf16>
      tpu.vector_store %arg5[%c0_12, %c0_13], %15 {strides = array<i32>} : memref<128x32xbf16, #tpu.memory_space<vmem>>, vector<128x32xbf16>,
    } else {
    }
    return
  }
  func.func @transform_0(%arg0: i32, %arg1: i32, %arg2: i32) -> (i32, i32) {
    %c0_i32 = arith.constant 0 : i32
    return %arg0, %arg2 : i32, i32
  }
  func.func @transform_1(%arg0: i32, %arg1: i32, %arg2: i32) -> (i32, i32) {
    %c0_i32 = arith.constant 0 : i32
    return %arg2, %arg1 : i32, i32
  }
  func.func @transform_2(%arg0: i32, %arg1: i32, %arg2: i32) -> (i32, i32) {
    %c0_i32 = arith.constant 0 : i32
    return %arg0, %arg1 : i32, i32
  }
}

</mosaic_0001>

<llo_original>
// kernel: tpu_custom_call.1
$region0: #{tpu_custom_call.1}
  #allocation0 [shape = 'u32[]', space=smem, size = 0x4, offset = 0x4, fixed_abs, tag = 'smem constant byte address 0x4 - core index']
  #allocation1 [shape = 'u32[72,128]{1,0:T(1,128)}', space=vmem, size = 0x9000, scoped, tag = 'internal scratch']
  #allocation2 [shape = 'f32[128,32]{1,0:T(8,128)}', space=vmem, size = 0x10000, scoped, tag = 'scratch operand']
  %s0 = inlined_call_operand.vmem [shape: f32[128,64], index: 0, kind: input, shape index: {}]
  %s1 = inlined_call_operand.vmem [shape: f32[64,32], index: 1, kind: input, shape index: {}]
  %s2 = inlined_call_operand.vmem [shape: bf16[128,32], index: 2, kind: output, shape index: {}]
  %s3 = sld [smem:[#allocation0]]
  $region26: #{tpu_custom_call.1} parent=0
    _
  %s5 = ssub.s32 1, %s3
  %s6 = scalar_select 0, %s5, %s3
  // Predicated region
  $region2: #{tpu_custom_call.1} parent=0 // pred_check
    _
  $region3: #{tpu_custom_call.1} parent=0 // pred_check_branch
    %8 = sbr.rel (0) target = $region5
  $region4: #{tpu_custom_call.1} parent=0 // pred_region
    _
  $region5: #{tpu_custom_call.1} parent=0 // pred_fallthru
    _
  // Predicated region
  $region6: #{tpu_custom_call.1} parent=0 // pred_check
    _
  $region7: #{tpu_custom_call.1} parent=0 // pred_check_branch
    %10 = sbr.rel (0) target = $region9
  $region8: #{tpu_custom_call.1} parent=0 // pred_region
    _
  $region9: #{tpu_custom_call.1} parent=0 // pred_fallthru
    _
  %p12 = scmp.eq.s32.totalorder 0, 0
  // Predicated region
  $region10: #{tpu_custom_call.1} parent=0 // pred_check
    %p13 = pneg %p12
  $region11: #{tpu_custom_call.1} parent=0 // pred_check_branch
    %15 = sbr.rel (%p13) target = $region13
  $region12: #{tpu_custom_call.1} parent=0 // pred_region
    %vm16 = vcmask 261120
    %17 = vst.msk [vmem:[#allocation2] sm:$0xff] %vm16, 0.0
    %18 = vst.msk [vmem:[#allocation2 + $0x8] sm:$0xff] %vm16, 0.0
    %19 = vst.msk [vmem:[#allocation2 + $0x10] sm:$0xff] %vm16, 0.0
    %20 = vst.msk [vmem:[#allocation2 + $0x18] sm:$0xff] %vm16, 0.0
    %21 = vst.msk [vmem:[#allocation2 + $0x20] sm:$0xff] %vm16, 0.0
    %22 = vst.msk [vmem:[#allocation2 + $0x28] sm:$0xff] %vm16, 0.0
    %23 = vst.msk [vmem:[#allocation2 + $0x30] sm:$0xff] %vm16, 0.0
    %24 = vst.msk [vmem:[#allocation2 + $0x38] sm:$0xff] %vm16, 0.0
    %25 = vst.msk [vmem:[#allocation2 + $0x40] sm:$0xff] %vm16, 0.0
    %26 = vst.msk [vmem:[#allocation2 + $0x48] sm:$0xff] %vm16, 0.0
    %27 = vst.msk [vmem:[#allocation2 + $0x50] sm:$0xff] %vm16, 0.0
    %28 = vst.msk [vmem:[#allocation2 + $0x58] sm:$0xff] %vm16, 0.0
    %29 = vst.msk [vmem:[#allocation2 + $0x60] sm:$0xff] %vm16, 0.0
    %30 = vst.msk [vmem:[#allocation2 + $0x68] sm:$0xff] %vm16, 0.0
    %31 = vst.msk [vmem:[#allocation2 + $0x70] sm:$0xff] %vm16, 0.0
    %32 = vst.msk [vmem:[#allocation2 + $0x78] sm:$0xff] %vm16, 0.0
  $region13: #{tpu_custom_call.1} parent=0 // pred_fallthru
    _
  %v33 = vld [vmem:[#allocation2] sm:$0xff]
  %v34 = vld [vmem:[#allocation2 + $0x8] sm:$0xff]
  %v35 = vld [vmem:[#allocation2 + $0x10] sm:$0xff]
  %v36 = vld [vmem:[#allocation2 + $0x18] sm:$0xff]
  %v37 = vld [vmem:[#allocation2 + $0x20] sm:$0xff]
  %v38 = vld [vmem:[#allocation2 + $0x28] sm:$0xff]
  %v39 = vld [vmem:[#allocation2 + $0x30] sm:$0xff]
  %v40 = vld [vmem:[#allocation2 + $0x38] sm:$0xff]
  %v41 = vld [vmem:[#allocation2 + $0x40] sm:$0xff]
  %v42 = vld [vmem:[#allocation2 + $0x48] sm:$0xff]
  %v43 = vld [vmem:[#allocation2 + $0x50] sm:$0xff]
  %v44 = vld [vmem:[#allocation2 + $0x58] sm:$0xff]
  %v45 = vld [vmem:[#allocation2 + $0x60] sm:$0xff]
  %v46 = vld [vmem:[#allocation2 + $0x68] sm:$0xff]
  %v47 = vld [vmem:[#allocation2 + $0x70] sm:$0xff]
  %v48 = vld [vmem:[#allocation2 + $0x78] sm:$0xff]
  %v49 = vld [vmem:[%s0] sm:$0xff]
  %v50 = vld [vmem:[%s0 + $0x8] sm:$0xff]
  %v51 = vld [vmem:[%s0 + $0x10] sm:$0xff]
  %v52 = vld [vmem:[%s0 + $0x18] sm:$0xff]
  %v53 = vld [vmem:[%s0 + $0x20] sm:$0xff]
  %v54 = vld [vmem:[%s0 + $0x28] sm:$0xff]
  %v55 = vld [vmem:[%s0 + $0x30] sm:$0xff]
  %v56 = vld [vmem:[%s0 + $0x38] sm:$0xff]
  %v57 = vld [vmem:[%s0 + $0x40] sm:$0xff]
  %v58 = vld [vmem:[%s0 + $0x48] sm:$0xff]
  %v59 = vld [vmem:[%s0 + $0x50] sm:$0xff]
  %v60 = vld [vmem:[%s0 + $0x58] sm:$0xff]
  %v61 = vld [vmem:[%s0 + $0x60] sm:$0xff]
  %v62 = vld [vmem:[%s0 + $0x68] sm:$0xff]
  %v63 = vld [vmem:[%s0 + $0x70] sm:$0xff]
  %v64 = vld [vmem:[%s0 + $0x78] sm:$0xff]
  %v65 = vpack.c.bf16 %v50, %v49
  %v66 = vpack.c.bf16 %v52, %v51
  %v67 = vpack.c.bf16 %v54, %v53
  %v68 = vpack.c.bf16 %v56, %v55
  %v69 = vpack.c.bf16 %v58, %v57
  %v70 = vpack.c.bf16 %v60, %v59
  %v71 = vpack.c.bf16 %v62, %v61
  %v72 = vpack.c.bf16 %v64, %v63
  %v73 = vld [vmem:[%s1] sm:$0xff]
  %v74 = vld [vmem:[%s1 + $0x8] sm:$0xff]
  %v75 = vld [vmem:[%s1 + $0x10] sm:$0xff]
  %v76 = vld [vmem:[%s1 + $0x18] sm:$0xff]
  %v77 = vld [vmem:[%s1 + $0x20] sm:$0xff]
  %v78 = vld [vmem:[%s1 + $0x28] sm:$0xff]
  %v79 = vld [vmem:[%s1 + $0x30] sm:$0xff]
  %v80 = vld [vmem:[%s1 + $0x38] sm:$0xff]
  %v81 = vpack.c.bf16 %v74, %v73
  %v82 = vpack.c.bf16 %v76, %v75
  %v83 = vpack.c.bf16 %v78, %v77
  %v84 = vpack.c.bf16 %v80, %v79
  %vm85 = vcmask 523264
  %v87 = vsel %vm85, %v65, 0
  %v90 = vsel %vm85, %v66, 0
  %v93 = vsel %vm85, %v67, 0
  %v96 = vsel %vm85, %v68, 0
  %v99 = vsel %vm85, %v69, 0
  %v102 = vsel %vm85, %v70, 0
  %v105 = vsel %vm85, %v71, 0
  %v108 = vsel %vm85, %v72, 0
  %110 = vmatpush.bf16.msra.mxu0 0
  %111 = vmatpush.bf16.msra.mxu0 0
  %112 = vmatpush.bf16.msra.mxu0 0
  %113 = vmatpush.bf16.msra.mxu0 0
  %114 = vmatpush.bf16.msra.mxu0 %v84
  %115 = vmatpush.bf16.msra.mxu0 %v83
  %116 = vmatpush.bf16.msra.mxu0 %v82
  %117 = vmatpush.bf16.msra.mxu0 %v81
  %118 = vmatmul.bf16.gmra.mxu0 %v87
  %v119 = vpop.f32.mrf.mxu0
  %v120 = vadd.f32 0.0, %v119
  %v121 = vpop.f32.mrf.mxu0
  %v122 = vadd.f32 0.0, %v121
  %123 = vmatmul.bf16.gmra.mxu0 %v90
  %v124 = vpop.f32.mrf.mxu0
  %v125 = vadd.f32 0.0, %v124
  %v126 = vpop.f32.mrf.mxu0
  %v127 = vadd.f32 0.0, %v126
  %128 = vmatmul.bf16.gmra.mxu0 %v93
  %v129 = vpop.f32.mrf.mxu0
  %v130 = vadd.f32 0.0, %v129
  %v131 = vpop.f32.mrf.mxu0
  %v132 = vadd.f32 0.0, %v131
  %133 = vmatmul.bf16.gmra.mxu0 %v96
  %v134 = vpop.f32.mrf.mxu0
  %v135 = vadd.f32 0.0, %v134
  %v136 = vpop.f32.mrf.mxu0
  %v137 = vadd.f32 0.0, %v136
  %138 = vmatmul.bf16.gmra.mxu0 %v99
  %v139 = vpop.f32.mrf.mxu0
  %v140 = vadd.f32 0.0, %v139
  %v141 = vpop.f32.mrf.mxu0
  %v142 = vadd.f32 0.0, %v141
  %143 = vmatmul.bf16.gmra.mxu0 %v102
  %v144 = vpop.f32.mrf.mxu0
  %v145 = vadd.f32 0.0, %v144
  %v146 = vpop.f32.mrf.mxu0
  %v147 = vadd.f32 0.0, %v146
  %148 = vmatmul.bf16.gmra.mxu0 %v105
  %v149 = vpop.f32.mrf.mxu0
  %v150 = vadd.f32 0.0, %v149
  %v151 = vpop.f32.mrf.mxu0
  %v152 = vadd.f32 0.0, %v151
  %153 = vmatmul.bf16.gmra.mxu0 %v108
  %v154 = vpop.f32.mrf.mxu0
  %v155 = vadd.f32 0.0, %v154
  %v156 = vpop.f32.mrf.mxu0
  %v157 = vadd.f32 0.0, %v156
  %158 = vdwg.mxu0
  %v159 = vadd.f32 %v33, %v120
  %v160 = vadd.f32 %v34, %v122
  %v161 = vadd.f32 %v35, %v125
  %v162 = vadd.f32 %v36, %v127
  %v163 = vadd.f32 %v37, %v130
  %v164 = vadd.f32 %v38, %v132
  %v165 = vadd.f32 %v39, %v135
  %v166 = vadd.f32 %v40, %v137
  %v167 = vadd.f32 %v41, %v140
  %v168 = vadd.f32 %v42, %v142
  %v169 = vadd.f32 %v43, %v145
  %v170 = vadd.f32 %v44, %v147
  %v171 = vadd.f32 %v45, %v150
  %v172 = vadd.f32 %v46, %v152
  %v173 = vadd.f32 %v47, %v155
  %v174 = vadd.f32 %v48, %v157
  %vm175 = vcmask 261120
  %176 = vst.msk [vmem:[#allocation2] sm:$0xff] %vm175, %v159
  %177 = vst.msk [vmem:[#allocation2 + $0x8] sm:$0xff] %vm175, %v160
  %178 = vst.msk [vmem:[#allocation2 + $0x10] sm:$0xff] %vm175, %v161
  %179 = vst.msk [vmem:[#allocation2 + $0x18] sm:$0xff] %vm175, %v162
  %180 = vst.msk [vmem:[#allocation2 + $0x20] sm:$0xff] %vm175, %v163
  %181 = vst.msk [vmem:[#allocation2 + $0x28] sm:$0xff] %vm175, %v164
  %182 = vst.msk [vmem:[#allocation2 + $0x30] sm:$0xff] %vm175, %v165
  %183 = vst.msk [vmem:[#allocation2 + $0x38] sm:$0xff] %vm175, %v166
  %184 = vst.msk [vmem:[#allocation2 + $0x40] sm:$0xff] %vm175, %v167
  %185 = vst.msk [vmem:[#allocation2 + $0x48] sm:$0xff] %vm175, %v168
  %186 = vst.msk [vmem:[#allocation2 + $0x50] sm:$0xff] %vm175, %v169
  %187 = vst.msk [vmem:[#allocation2 + $0x58] sm:$0xff] %vm175, %v170
  %188 = vst.msk [vmem:[#allocation2 + $0x60] sm:$0xff] %vm175, %v171
  %189 = vst.msk [vmem:[#allocation2 + $0x68] sm:$0xff] %vm175, %v172
  %190 = vst.msk [vmem:[#allocation2 + $0x70] sm:$0xff] %vm175, %v173
  %191 = vst.msk [vmem:[#allocation2 + $0x78] sm:$0xff] %vm175, %v174
  // Predicated region
  $region14: #{tpu_custom_call.1} parent=0 // pred_check
    %p192 = pneg %p12
  $region15: #{tpu_custom_call.1} parent=0 // pred_check_branch
    %194 = sbr.rel (%p192) target = $region17
  $region16: #{tpu_custom_call.1} parent=0 // pred_region
    %v195 = vld [vmem:[#allocation2] sm:$0xff]
    %v196 = vld [vmem:[#allocation2 + $0x8] sm:$0xff]
    %v197 = vld [vmem:[#allocation2 + $0x10] sm:$0xff]
    %v198 = vld [vmem:[#allocation2 + $0x18] sm:$0xff]
    %v199 = vld [vmem:[#allocation2 + $0x20] sm:$0xff]
    %v200 = vld [vmem:[#allocation2 + $0x28] sm:$0xff]
    %v201 = vld [vmem:[#allocation2 + $0x30] sm:$0xff]
    %v202 = vld [vmem:[#allocation2 + $0x38] sm:$0xff]
    %v203 = vld [vmem:[#allocation2 + $0x40] sm:$0xff]
    %v204 = vld [vmem:[#allocation2 + $0x48] sm:$0xff]
    %v205 = vld [vmem:[#allocation2 + $0x50] sm:$0xff]
    %v206 = vld [vmem:[#allocation2 + $0x58] sm:$0xff]
    %v207 = vld [vmem:[#allocation2 + $0x60] sm:$0xff]
    %v208 = vld [vmem:[#allocation2 + $0x68] sm:$0xff]
    %v209 = vld [vmem:[#allocation2 + $0x70] sm:$0xff]
    %v210 = vld [vmem:[#allocation2 + $0x78] sm:$0xff]
    %v211 = vpack.c.bf16 %v195, %v195
    %v212 = vpack.c.bf16 %v196, %v196
    %v213 = vpack.c.bf16 %v197, %v197
    %v214 = vpack.c.bf16 %v198, %v198
    %v215 = vpack.c.bf16 %v199, %v199
    %v216 = vpack.c.bf16 %v200, %v200
    %v217 = vpack.c.bf16 %v201, %v201
    %v218 = vpack.c.bf16 %v202, %v202
    %v219 = vpack.c.bf16 %v203, %v203
    %v220 = vpack.c.bf16 %v204, %v204
    %v221 = vpack.c.bf16 %v205, %v205
    %v222 = vpack.c.bf16 %v206, %v206
    %v223 = vpack.c.bf16 %v207, %v207
    %v224 = vpack.c.bf16 %v208, %v208
    %v225 = vpack.c.bf16 %v209, %v209
    %v226 = vpack.c.bf16 %v210, %v210
    %vm227 = vcmask 257024
    %228 = vst.msk [vmem:[%s2] sm:$0xf] %vm227, %v211
    %229 = vst.msk [vmem:[%s2 + $0x4] sm:$0xf] %vm227, %v212
    %230 = vst.msk [vmem:[%s2 + $0x8] sm:$0xf] %vm227, %v213
    %231 = vst.msk [vmem:[%s2 + $0xc] sm:$0xf] %vm227, %v214
    %232 = vst.msk [vmem:[%s2 + $0x10] sm:$0xf] %vm227, %v215
    %233 = vst.msk [vmem:[%s2 + $0x14] sm:$0xf] %vm227, %v216
    %234 = vst.msk [vmem:[%s2 + $0x18] sm:$0xf] %vm227, %v217
    %235 = vst.msk [vmem:[%s2 + $0x1c] sm:$0xf] %vm227, %v218
    %236 = vst.msk [vmem:[%s2 + $0x20] sm:$0xf] %vm227, %v219
    %237 = vst.msk [vmem:[%s2 + $0x24] sm:$0xf] %vm227, %v220
    %238 = vst.msk [vmem:[%s2 + $0x28] sm:$0xf] %vm227, %v221
    %239 = vst.msk [vmem:[%s2 + $0x2c] sm:$0xf] %vm227, %v222
    %240 = vst.msk [vmem:[%s2 + $0x30] sm:$0xf] %vm227, %v223
    %241 = vst.msk [vmem:[%s2 + $0x34] sm:$0xf] %vm227, %v224
    %242 = vst.msk [vmem:[%s2 + $0x38] sm:$0xf] %vm227, %v225
    %243 = vst.msk [vmem:[%s2 + $0x3c] sm:$0xf] %vm227, %v226
  $region17: #{tpu_custom_call.1} parent=0 // pred_fallthru
    _
  // Predicated region
  $region18: #{tpu_custom_call.1} parent=0 // pred_check
    _
  $region19: #{tpu_custom_call.1} parent=0 // pred_check_branch
    %245 = sbr.rel (0) target = $region21
  $region20: #{tpu_custom_call.1} parent=0 // pred_region
    _
  $region21: #{tpu_custom_call.1} parent=0 // pred_fallthru
    _
  // Predicated region
  $region22: #{tpu_custom_call.1} parent=0 // pred_check
    _
  $region23: #{tpu_custom_call.1} parent=0 // pred_check_branch
    %247 = sbr.rel (0) target = $region25
  $region24: #{tpu_custom_call.1} parent=0 // pred_region
    _
  $region25: #{tpu_custom_call.1} parent=0 // pred_fallthru
    _

</llo_original>
